<compile_context>
chip_gen: v5e
topology: v5e:2x2
jax: 0.10.0
libtpu: 0.0.40
codegen_flags: <defaults>
</compile_context>

<pallas_src>
import functools

import jax
import jax.numpy as jnp
from jax.experimental import pallas as pl
from jax.experimental.pallas import tpu as pltpu


def _round_up(a, b):
    return (a + b - 1) // b * b


# ----------------------------------------------------------------------------
# Kernel 1: fused QKV projection, single (tm, C) @ (C, 3*HS) matmul.
# ----------------------------------------------------------------------------
def _qkv_kernel(x_ref, wqkv_ref, q_ref, k_ref, v_ref, *, head_dim_total,
                compute_dtype):
    HS = head_dim_total
    x = x_ref[...].astype(compute_dtype)
    res = jnp.dot(x, wqkv_ref[...], preferred_element_type=jnp.float32)
    q_ref[...] = res[:, :HS].astype(q_ref.dtype)
    k_ref[...] = res[:, HS:2 * HS].astype(k_ref.dtype)
    v_ref[...] = res[:, 2 * HS:].astype(v_ref.dtype)


# ----------------------------------------------------------------------------
# Kernel 2: attention (all heads) + fused output projection.
# Grid = (B, nq), qi innermost.  Blocks:
#   q_ref      : (1, tq, HS)    wproj_ref : (HS, C)   bproj_ref : (1, C)
#   k_ref/v_ref: (1, T, HS)     out_ref   : (1, tq, C)
#   map_ref    : (H, 1, tq, T)  (optional)   att_sc : (tq, HS) f32 scratch
# ----------------------------------------------------------------------------
def _attn_proj_kernel(q_ref, k_ref, v_ref, wproj_ref, bproj_ref, *rest,
                      n_head, head_size, masked, window_size,
                      compute_dtype, emit_maps, approx_recip):
    if emit_maps:
        out_ref, map_ref, att_sc = rest
    else:
        out_ref, att_sc = rest
        map_ref = None

    H, hs = n_head, head_size
    q = q_ref[0]                      # (tq, HS)
    k = k_ref[0]                      # (T,  HS)
    v = v_ref[0]                      # (T,  HS)
    tq = q.shape[0]
    T = k.shape[0]

    # Mask geometry, built once per tile (global row = q_start + local row).
    q_start = pl.program_id(1) * tq
    row = q_start + jax.lax.broadcasted_iota(jnp.int32, (tq, T), 0)
    col = jax.lax.broadcasted_iota(jnp.int32, (tq, T), 1)
    win_mask = None
    if window_size is not None:
        # reference: triu(ones,-w)*tril(ones,w)  ==  |row-col| <= w
        win_mask = ((col - row) <= window_size) & ((row - col) <= window_size)
    causal_mask = (col <= row) if masked else None

    for h in range(H):
        sl = slice(h * hs, (h + 1) * hs)
        qh = q[:, sl].astype(compute_dtype)
        kh = k[:, sl].astype(compute_dtype)
        vh = v[:, sl].astype(compute_dtype)

        # n_embd**-0.5 scale is pre-folded into Wq in the wrapper.
        wei = jnp.einsum('qd,kd->qk', qh, kh,
                         preferred_element_type=jnp.float32)
        if win_mask is not None:
            # wei*wm - 1e10*(1-wm)  ==  where(wm, wei, -1e10)  (wei finite here)
            wei = jnp.where(win_mask, wei, -1.0e10)
        if causal_mask is not None:
            wei = jnp.where(causal_mask, wei, -jnp.inf)

        # Numerically-stable softmax.  The diagonal / earliest columns are
        # never fully masked, so no all--inf-row NaN case (padded query rows
        # reduce to a finite uniform row and are sliced off in the wrapper).
        wei = wei - jnp.max(wei, axis=-1, keepdims=True)
        p = jnp.exp(wei)
        p = p * pl.reciprocal(jnp.sum(p, axis=-1, keepdims=True),
                              approx=approx_recip)

        if map_ref is not None:
            map_ref[h, 0] = p.astype(map_ref.dtype)

        # TODO(synk): dropout on p is a no-op (inference semantics).
        # Per-head output written into the lane-dense scratch -> no concat.
        att_sc[:, sl] = jnp.einsum('qk,kd->qd', p.astype(compute_dtype), vh,
                                   preferred_element_type=jnp.float32)

    att = att_sc[...].astype(compute_dtype)                     # (tq, HS)
    out = jnp.dot(att, wproj_ref[...],
                  preferred_element_type=jnp.float32) + bproj_ref[...]
    out_ref[0] = out.astype(out_ref.dtype)


def multi_head_attention(x, wq, wk, wv, w_proj, b_proj, *,
                         masked=True, window_size=None,
                         compute_dtype=jnp.float32,
                         return_maps=True, maps_dtype=jnp.float32,
                         approx_recip=None,
                         q_tile=128, m_tile=512):
    B, T, C = x.shape
    H, hs, _ = wq.shape
    HS = H * hs
    compute_dtype = jnp.dtype(compute_dtype)
    if approx_recip is None:
        approx_recip = (compute_dtype == jnp.dtype(jnp.bfloat16))

    # --- weights prepared once in the wrapper (MXU-native orientation) -------
    scale = C ** -0.5                                  # intentionally n_embd
    wqkv = jnp.concatenate([wq.reshape(HS, C) * scale,
                            wk.reshape(HS, C),
                            wv.reshape(HS, C)], axis=0).T         # (C, 3*HS)
    wqkv = wqkv.astype(compute_dtype)
    w_proj_t = w_proj.T.astype(compute_dtype)                     # (HS, C)
    b_proj_2d = b_proj.reshape(1, C).astype(jnp.float32)

    # ---------------- kernel 1: fused QKV projection (M = B*T rows) ----------
    M = B * T
    if M <= m_tile:
        tm = M
    else:
        tm = max(8, (m_tile // 8) * 8)
    M_pad = _round_up(M, tm)
    x_flat = x.reshape(M, C)
    if M_pad != M:
        x_flat = jnp.pad(x_flat, ((0, M_pad - M), (0, 0)))

    cbytes = compute_dtype.itemsize
    k1_vmem = (2 * tm * C * x.dtype.itemsize        # x tile, double-buffered
               + C * 3 * HS * cbytes                # resident fused weight
               + 3 * 2 * tm * HS * cbytes)          # q/k/v output tiles
    k1_limit = int(min(max(1.3 * k1_vmem + (2 << 20), 32 << 20), 128 << 20))

    q_all, k_all, v_all = pl.pallas_call(
        functools.partial(_qkv_kernel, head_dim_total=HS,
                          compute_dtype=compute_dtype),
        grid=(M_pad // tm,),
        in_specs=[
            pl.BlockSpec((tm, C), lambda i: (i, 0)),                     # x
            pl.BlockSpec((C, 3 * HS), lambda i: (0, 0),
                         pipeline_mode=pl.Buffered(1)),                  # Wqkv
        ],
        out_specs=[pl.BlockSpec((tm, HS), lambda i: (i, 0))] * 3,
        out_shape=[jax.ShapeDtypeStruct((M_pad, HS), compute_dtype)] * 3,
        compiler_params=pltpu.CompilerParams(
            dimension_semantics=("parallel",),
            vmem_limit_bytes=k1_limit),
    )(x_flat, wqkv)

    if M_pad != M:
        q_all, k_all, v_all = (a[:M] for a in (q_all, k_all, v_all))
    q_all = q_all.reshape(B, T, HS)
    k_all = k_all.reshape(B, T, HS)
    v_all = v_all.reshape(B, T, HS)

    # -------- kernel 2: (batch, q-tile) grid, attention + fused projection ---
    if T <= q_tile:
        tq = T
    else:
        tq = max(8, (q_tile // 8) * 8)
    T_pad = _round_up(T, tq)
    nq = T_pad // tq
    if T_pad != T:
        q_all = jnp.pad(q_all, ((0, 0), (0, T_pad - T), (0, 0)))

    maps_bytes = jnp.dtype(maps_dtype).itemsize
    k2_vmem = (2 * tq * HS * cbytes                 # q tile (double-buffered)
               + 2 * T * HS * cbytes                # K + V, Buffered(1)
               + HS * C * cbytes                    # W_proj, Buffered(1)
               + 2 * C * 4                          # b_proj
               + 2 * tq * C * 4                     # out tile
               + tq * HS * 4)                       # f32 scratch
    if return_maps:
        k2_vmem += 2 * H * tq * T * maps_bytes
    k2_limit = int(min(max(1.3 * k2_vmem + (2 << 20), 32 << 20), 128 << 20))

    kern = functools.partial(
        _attn_proj_kernel, n_head=H, head_size=hs, masked=masked,
        window_size=window_size, compute_dtype=compute_dtype,
        emit_maps=return_maps, approx_recip=approx_recip)

    in_specs = [
        pl.BlockSpec((1, tq, HS), lambda b, qi: (b, qi, 0)),             # q
        pl.BlockSpec((1, T, HS), lambda b, qi: (b, 0, 0),
                     pipeline_mode=pl.Buffered(1)),                      # K
        pl.BlockSpec((1, T, HS), lambda b, qi: (b, 0, 0),
                     pipeline_mode=pl.Buffered(1)),                      # V
        pl.BlockSpec((HS, C), lambda b, qi: (0, 0),
                     pipeline_mode=pl.Buffered(1)),                      # Wp^T
        pl.BlockSpec((1, C), lambda b, qi: (0, 0),
                     pipeline_mode=pl.Buffered(1)),                      # b
    ]
    out_specs = [pl.BlockSpec((1, tq, C), lambda b, qi: (b, qi, 0))]
    out_shape = [jax.ShapeDtypeStruct((B, T_pad, C), jnp.float32)]
    if return_maps:
        out_specs.append(pl.BlockSpec((H, 1, tq, T), lambda b, qi: (0, b, qi, 0)))
        out_shape.append(jax.ShapeDtypeStruct((H, B, T_pad, T), maps_dtype))

    results = pl.pallas_call(
        kern,
        grid=(B, nq),
        in_specs=in_specs,
        out_specs=out_specs,
        out_shape=out_shape,
        scratch_shapes=[pltpu.VMEM((tq, HS), jnp.float32)],
        compiler_params=pltpu.CompilerParams(
            dimension_semantics=("parallel", "parallel"),
            vmem_limit_bytes=k2_limit),
    )(q_all, k_all, v_all, w_proj_t, b_proj_2d)

    if return_maps:
        out, maps = results
    else:
        (out,) = results
        maps = None

    if T_pad != T:
        out = out[:, :T]
        if maps is not None:
            maps = maps[:, :, :T]

    if return_maps:
        return out, maps
    return out


def _reference(x, wq, wk, wv, w_proj, b_proj, masked, window_size):
    """Pure-JAX reference mirroring the PyTorch forward."""
    B, T, C = x.shape
    outs, maps = [], []
    for h in range(wq.shape[0]):
        q = x @ wq[h].T
        k = x @ wk[h].T
        v = x @ wv[h].T
        wei = (q @ jnp.swapaxes(k, -1, -2)) * C ** -0.5
        if window_size is not None:
            ones = jnp.ones((T, T))
            wm = jnp.triu(ones, k=-window_size) * jnp.tril(ones, k=window_size)
            wei = wei * wm - 1.0e10 * (1.0 - wm)
        if masked:
            tril = jnp.tril(jnp.ones((T, T)))
            wei = jnp.where(tril == 0, -jnp.inf, wei)
        wei = jax.nn.softmax(wei, axis=-1)
        maps.append(wei)
        outs.append(wei @ v)
    cat = jnp.concatenate(outs, axis=-1)
    return cat @ w_proj.T + b_proj, jnp.stack(maps, axis=0)


if __name__ == "__main__":
    key = jax.random.PRNGKey(0)
    kx, kq, kk, kv, kw, kb, kx2 = jax.random.split(key, 7)

    # --- config A: small shapes, f32 parity across mask modes ----------------
    B, T, n_embd, n_head, head_size = 2, 8, 32, 4, 8
    x = jax.random.normal(kx, (B, T, n_embd), dtype=jnp.float32)
    wq = jax.random.normal(kq, (n_head, head_size, n_embd), jnp.float32) * 0.1
    wk = jax.random.normal(kk, (n_head, head_size, n_embd), jnp.float32) * 0.1
    wv = jax.random.normal(kv, (n_head, head_size, n_embd), jnp.float32) * 0.1
    w_proj = jax.random.normal(kw, (n_embd, n_head * head_size), jnp.float32) * 0.1
    b_proj = jax.random.normal(kb, (n_embd,), jnp.float32) * 0.1

    for masked, window_size in [(True, None), (True, 2), (False, 3)]:
        out, maps = multi_head_attention(
            x, wq, wk, wv, w_proj, b_proj,
            masked=masked, window_size=window_size,
            compute_dtype=jnp.float32, return_maps=True)
        out = jax.block_until_ready(out)
        maps = jax.block_until_ready(maps)
        ref_out, ref_maps = _reference(x, wq, wk, wv, w_proj, b_proj,
                                       masked, window_size)
        assert out.shape == (B, T, n_embd)
        assert maps.shape == (n_head, B, T, T)
        assert jnp.allclose(out, ref_out, atol=1e-5, rtol=1e-5), \
            ("out mismatch", masked, window_size)
        assert jnp.allclose(maps, ref_maps, atol=1e-5, rtol=1e-5), \
            ("maps mismatch", masked, window_size)

    # --- config B: non-divisible tiles -> exercises the padding path ---------
    T2 = 24
    x2 = jax.random.normal(kx2, (B, T2, n_embd), dtype=jnp.float32)
    out2, maps2 = multi_head_attention(
        x2, wq, wk, wv, w_proj, b_proj, masked=True, window_size=None,
        compute_dtype=jnp.float32, return_maps=True, q_tile=16, m_tile=32)
    out2 = jax.block_until_ready(out2)
    ref_out2, ref_maps2 = _reference(x2, wq, wk, wv, w_proj, b_proj, True, None)
    assert out2.shape == (B, T2, n_embd) and maps2.shape == (n_head, B, T2, T2)
    assert jnp.allclose(out2, ref_out2, atol=1e-5, rtol=1e-5), "padded out mismatch"
    assert jnp.allclose(maps2, ref_maps2, atol=1e-5, rtol=1e-5), "padded maps mismatch"

    # --- config C: bf16 perf path (bf16 MXU, bf16 maps, approx reciprocal) ---
    out3, maps3 = multi_head_attention(
        x, wq, wk, wv, w_proj, b_proj, masked=True, window_size=None,
        compute_dtype=jnp.bfloat16, return_maps=True, maps_dtype=jnp.bfloat16)
    out3 = jax.block_until_ready(out3)
    ref_out3, ref_maps3 = _reference(x, wq, wk, wv, w_proj, b_proj, True, None)
    assert jnp.allclose(out3, ref_out3, atol=5e-2, rtol=5e-2), "bf16 out mismatch"
    assert jnp.allclose(maps3.astype(jnp.float32), ref_maps3,
                        atol=5e-2, rtol=5e-2), "bf16 maps mismatch"

    # maps can also be skipped entirely (removes the dominant HBM write stream)
    out4 = multi_head_attention(
        x, wq, wk, wv, w_proj, b_proj, masked=True, window_size=None,
        compute_dtype=jnp.bfloat16, return_maps=False)
    out4 = jax.block_until_ready(out4)
    assert jnp.allclose(out4, ref_out3, atol=5e-2, rtol=5e-2), "no-maps out mismatch"

    print("KERNEL_OK")
</pallas_src>

<mosaic_0001>
module attributes {stable_mosaic.version = 11 : i64} {
  func.func @_qkv_kernel(%arg0: i32, %arg1: memref<16x32xf32, #tpu.memory_space<vmem>>, %arg2: memref<32x96xf32, #tpu.memory_space<vmem>>, %arg3: memref<16x32xf32, #tpu.memory_space<vmem>>, %arg4: memref<16x32xf32, #tpu.memory_space<vmem>>, %arg5: memref<16x32xf32, #tpu.memory_space<vmem>>) attributes {dimension_semantics = [#tpu.dimension_semantics<parallel>], iteration_bounds = array<i64: 1>, scalar_prefetch = 0 : i64, scratch_operands = 0 : i64, tpu.core_type = #tpu.core_type<tc>, window_params = [{transform_indices = @transform_0, window_bounds = array<i64: 16, 32>}, {pipeline_mode = #tpu.pipeline_mode<synchronous>, transform_indices = @transform_1, window_bounds = array<i64: 32, 96>}, {transform_indices = @transform_2, window_bounds = array<i64: 16, 32>}, {transform_indices = @transform_3, window_bounds = array<i64: 16, 32>}, {transform_indices = @transform_4, window_bounds = array<i64: 16, 32>}]} {
    %c0 = arith.constant 0 : index
    %c0_0 = arith.constant 0 : index
    %0 = vector.load %arg1[%c0, %c0_0] : memref<16x32xf32, #tpu.memory_space<vmem>>, vector<16x32xf32>
    %c0_1 = arith.constant 0 : index
    %c0_2 = arith.constant 0 : index
    %1 = vector.load %arg2[%c0_1, %c0_2] : memref<32x96xf32, #tpu.memory_space<vmem>>, vector<32x96xf32>
    %cst = arith.constant dense<0.000000e+00> : vector<16x96xf32>
    %2 = tpu.matmul %0, %1, %cst {dimension_numbers = #tpu.dot_dimension_numbers<[1], [0], [0], [1], [0, 0, 1, 1], [], []>} : vector<16x32xf32>, vector<32x96xf32>, vector<16x96xf32> -> vector<16x96xf32>
    %3 = vector.extract_strided_slice %2 {offsets = [0, 0], sizes = [16, 32], strides = [1, 1]} : vector<16x96xf32> to vector<16x32xf32>
    %c0_3 = arith.constant 0 : index
    %c0_4 = arith.constant 0 : index
    %4 = vector.load %arg3[%c0_3, %c0_4] : memref<16x32xf32, #tpu.memory_space<vmem>>, vector<16x32xf32>
    tpu.vector_store %arg3[%c0_3, %c0_4], %3 {strides = array<i32>} : memref<16x32xf32, #tpu.memory_space<vmem>>, vector<16x32xf32>,
    %5 = vector.extract_strided_slice %2 {offsets = [0, 32], sizes = [16, 32], strides = [1, 1]} : vector<16x96xf32> to vector<16x32xf32>
    %c0_5 = arith.constant 0 : index
    %c0_6 = arith.constant 0 : index
    %6 = vector.load %arg4[%c0_5, %c0_6] : memref<16x32xf32, #tpu.memory_space<vmem>>, vector<16x32xf32>
    tpu.vector_store %arg4[%c0_5, %c0_6], %5 {strides = array<i32>} : memref<16x32xf32, #tpu.memory_space<vmem>>, vector<16x32xf32>,
    %7 = vector.extract_strided_slice %2 {offsets = [0, 64], sizes = [16, 32], strides = [1, 1]} : vector<16x96xf32> to vector<16x32xf32>
    %c0_7 = arith.constant 0 : index
    %c0_8 = arith.constant 0 : index
    %8 = vector.load %arg5[%c0_7, %c0_8] : memref<16x32xf32, #tpu.memory_space<vmem>>, vector<16x32xf32>
    tpu.vector_store %arg5[%c0_7, %c0_8], %7 {strides = array<i32>} : memref<16x32xf32, #tpu.memory_space<vmem>>, vector<16x32xf32>,
    return
  }
  func.func @transform_0(%arg0: i32) -> (i32, i32) {
    %c0_i32 = arith.constant 0 : i32
    %c0_i32_0 = arith.constant 0 : i32
    return %arg0, %c0_i32 : i32, i32
  }
  func.func @transform_1(%arg0: i32) -> (i32, i32) {
    %c0_i32 = arith.constant 0 : i32
    %c0_i32_0 = arith.constant 0 : i32
    %c0_i32_1 = arith.constant 0 : i32
    return %c0_i32, %c0_i32_0 : i32, i32
  }
  func.func @transform_2(%arg0: i32) -> (i32, i32) {
    %c0_i32 = arith.constant 0 : i32
    %c0_i32_0 = arith.constant 0 : i32
    return %arg0, %c0_i32 : i32, i32
  }
  func.func @transform_3(%arg0: i32) -> (i32, i32) {
    %c0_i32 = arith.constant 0 : i32
    %c0_i32_0 = arith.constant 0 : i32
    return %arg0, %c0_i32 : i32, i32
  }
  func.func @transform_4(%arg0: i32) -> (i32, i32) {
    %c0_i32 = arith.constant 0 : i32
    %c0_i32_0 = arith.constant 0 : i32
    return %arg0, %c0_i32 : i32, i32
  }
}

</mosaic_0001>

<llo_original>
// kernel: tpu_custom_call.1
$region0: #{tpu_custom_call.1}
  #allocation0 [shape = 'u32[]', space=smem, size = 0x4, offset = 0x4, fixed_abs, tag = 'smem constant byte address 0x4 - core index']
  #allocation1 [shape = 'u32[72,128]{1,0:T(1,128)}', space=vmem, size = 0x9000, scoped, tag = 'internal scratch']
  %s0 = inlined_call_operand.hbm [shape: f32[16,32], index: 0, kind: input, shape index: {}]
  %s1 = inlined_call_operand.hbm [shape: f32[32,96], index: 1, kind: input, shape index: {}]
  %s2 = inlined_call_operand.hbm [shape: f32[16,32], index: 2, kind: output, shape index: {0}]
  %s3 = inlined_call_operand.hbm [shape: f32[16,32], index: 3, kind: output, shape index: {1}]
  %s4 = inlined_call_operand.hbm [shape: f32[16,32], index: 4, kind: output, shape index: {2}]
  %5 = xla_tuple %s2, %s3, %s4
  %s6 = sld [smem:[#allocation0]]
  $region42: #{tpu_custom_call.1} parent=0
    _
  %s8 = ssub.s32 1, %s6
  %s9 = scalar_select 0, %s8, %s6
  $region1: #{tpu_custom_call.1} parent=0
    #allocation2 [shape = 'u8[8192]{0}', space=vmem, size = 0x2000, scoped, tag = 'input window, operand 0, single buffered']
    #allocation3 [shape = 's32[1]{0}', space=sflag, size = 0x4, scoped, tag = 'scoped memory for tpu_custom_call.1']
    #allocation4 [shape = 's32[1]{0}', space=sflag, size = 0x4, scoped, tag = 'scoped memory for tpu_custom_call.1']
    #allocation5 [shape = 'u8[16384]{0}', space=vmem, size = 0x4000, scoped, tag = 'input window, operand 1, single buffered']
    #allocation6 [shape = 's32[1]{0}', space=sflag, size = 0x4, scoped, tag = 'scoped memory for tpu_custom_call.1']
    #allocation7 [shape = 'u8[8192]{0}', space=vmem, size = 0x2000, scoped, tag = 'output window, operand 0, single buffered']
    #allocation8 [shape = 'u8[8192]{0}', space=vmem, size = 0x2000, scoped, tag = 'output window, operand 1, single buffered']
    #allocation9 [shape = 's32[1]{0}', space=sflag, size = 0x4, scoped, tag = 'scoped memory for tpu_custom_call.1']
    #allocation10 [shape = 'u8[8192]{0}', space=vmem, size = 0x2000, scoped, tag = 'output window, operand 2, single buffered']
    %10 = vsyncpa [#allocation3], 0
    %11 = vsyncpa [#allocation6], 0
    %12 = vsyncpa [#allocation4], 0
    %13 = vsyncpa [#allocation9], 0
    // Predicated region
    $region2: #{tpu_custom_call.1} parent=1 // pred_check
      _
    $region3: #{tpu_custom_call.1} parent=1 // pred_check_branch
      %15 = sbr.rel (0) target = $region5
    $region4: #{tpu_custom_call.1} parent=1 // pred_region
      %17 = vsyncadd [#allocation3], 0
      %s18 = sshll.u32 %s0, 4
      %s19 = int_to_ptr.hbm [resolvable:$true] %s18
      %s20 = sshll.u32 [#allocation2], 4
      %s21 = int_to_ptr.vmem [resolvable:$true] %s20
      %26 = dma.hbm_to_vmem [thread:$0]  %s19, 256, %s21, [#allocation3], 128, 128, 8
    $region5: #{tpu_custom_call.1} parent=1 // pred_fallthru
      _
    // Predicated region
    $region6: #{tpu_custom_call.1} parent=1 // pred_check
      _
    $region7: #{tpu_custom_call.1} parent=1 // pred_check_branch
      %28 = sbr.rel (0) target = $region9
    $region8: #{tpu_custom_call.1} parent=1 // pred_region
      %30 = vsyncadd [#allocation6], 0
      %s31 = sshll.u32 %s1, 4
      %s32 = int_to_ptr.hbm [resolvable:$true] %s31
      %s33 = sshll.u32 [#allocation5], 4
      %s34 = int_to_ptr.vmem [resolvable:$true] %s33
      %39 = dma.hbm_to_vmem [thread:$0]  %s32, 512, %s34, [#allocation6], 128, 128, 8
    $region9: #{tpu_custom_call.1} parent=1 // pred_fallthru
      _
    // Predicated region
    $region10: #{tpu_custom_call.1} parent=1 // pred_check
      _
    $region11: #{tpu_custom_call.1} parent=1 // pred_check_branch
      %41 = sbr.rel (0) target = $region13
    $region12: #{tpu_custom_call.1} parent=1 // pred_region
      %43 = dma.done [#allocation3], 256
    $region13: #{tpu_custom_call.1} parent=1 // pred_fallthru
      _
    // Predicated region
    $region14: #{tpu_custom_call.1} parent=1 // pred_check
      _
    $region15: #{tpu_custom_call.1} parent=1 // pred_check_branch
      %45 = sbr.rel (0) target = $region17
    $region16: #{tpu_custom_call.1} parent=1 // pred_region
      %47 = dma.done [#allocation6], 512
    $region17: #{tpu_custom_call.1} parent=1 // pred_fallthru
      _
    %v48 = vld [vmem:[#allocation2] sm:$0xff]
    %v49 = vld [vmem:[#allocation2 + $0x8] sm:$0xff]
    %v50 = vld [vmem:[#allocation5] sm:$0xff]
    %v51 = vld [vmem:[#allocation5 + $0x8] sm:$0xff]
    %v52 = vld [vmem:[#allocation5 + $0x10] sm:$0xff]
    %v53 = vld [vmem:[#allocation5 + $0x18] sm:$0xff]
    %vm54 = vcmask 261120
    %v56 = vsel %vm54, %v48, 0
    %v59 = vsel %vm54, %v49, 0
    %61 = vmatpush.msra.mxu0 0.0
    %62 = vmatpush.msra.mxu0 0.0
    %63 = vmatpush.msra.mxu0 0.0
    %64 = vmatpush.msra.mxu0 0.0
    %65 = vmatpush.msra.mxu0 0.0
    %66 = vmatpush.msra.mxu0 0.0
    %67 = vmatpush.msra.mxu0 0.0
    %68 = vmatpush.msra.mxu0 0.0
    %69 = vmatpush.msra.mxu0 0.0
    %70 = vmatpush.msra.mxu0 0.0
    %71 = vmatpush.msra.mxu0 0.0
    %72 = vmatpush.msra.mxu0 0.0
    %73 = vmatpush.msra.mxu0 %v53
    %74 = vmatpush.msra.mxu0 %v52
    %75 = vmatpush.msra.mxu0 %v51
    %76 = vmatpush.msra.mxu0 %v50
    %77 = vmatmul.f32.gmra.mxu0 %v56
    %v78 = vpop.f32.mrf.mxu0
    %v79 = vadd.f32 0.0, %v78
    %80 = vmatmul.f32.gmra.mxu0 %v59
    %v81 = vpop.f32.mrf.mxu0
    %v82 = vadd.f32 0.0, %v81
    %83 = vdwg.mxu0
    %84 = vst.msk [vmem:[#allocation7] sm:$0xff] %vm54, %v79
    %85 = vst.msk [vmem:[#allocation7 + $0x8] sm:$0xff] %vm54, %v82
    %88 = vrot.lane.b32.xlu0 %v79, 96
    %v89 = vpop.permute.xlu0 %88
    %90 = vrot.lane.b32.xlu0 %v82, 96
    %v91 = vpop.permute.xlu0 %90
    %94 = vst.msk [vmem:[#allocation8] sm:$0xff] %vm54, %v89
    %95 = vst.msk [vmem:[#allocation8 + $0x8] sm:$0xff] %vm54, %v91
    %96 = vrot.lane.b32.xlu0 %v79, 64
    %v97 = vpop.permute.xlu0 %96
    %98 = vrot.lane.b32.xlu0 %v82, 64
    %v99 = vpop.permute.xlu0 %98
    %102 = vst.msk [vmem:[#allocation10] sm:$0xff] %vm54, %v97
    %103 = vst.msk [vmem:[#allocation10 + $0x8] sm:$0xff] %vm54, %v99
    // Predicated region
    $region18: #{tpu_custom_call.1} parent=1 // pred_check
      _
    $region19: #{tpu_custom_call.1} parent=1 // pred_check_branch
      %105 = sbr.rel (0) target = $region21
    $region20: #{tpu_custom_call.1} parent=1 // pred_region
      %107 = vsyncadd [#allocation4], 0
      %s108 = sshll.u32 [#allocation7], 4
      %s109 = int_to_ptr.vmem [resolvable:$true] %s108
      %s110 = sshll.u32 %s2, 4
      %s111 = int_to_ptr.hbm [resolvable:$true] %s110
      %116 = dma.vmem_to_hbm [thread:$0]  %s109, 256, %s111, [#allocation4], 128, 128, 8
    $region21: #{tpu_custom_call.1} parent=1 // pred_fallthru
      _
    // Predicated region
    $region22: #{tpu_custom_call.1} parent=1 // pred_check
      _
    $region23: #{tpu_custom_call.1} parent=1 // pred_check_branch
      %118 = sbr.rel (0) target = $region25
    $region24: #{tpu_custom_call.1} parent=1 // pred_region
      %120 = vsyncadd [#allocation9], 0
      %s121 = sshll.u32 [#allocation8], 4
      %s122 = int_to_ptr.vmem [resolvable:$true] %s121
      %s123 = sshll.u32 %s3, 4
      %s124 = int_to_ptr.hbm [resolvable:$true] %s123
      %129 = dma.vmem_to_hbm [thread:$0]  %s122, 256, %s124, [#allocation9], 128, 128, 8
    $region25: #{tpu_custom_call.1} parent=1 // pred_fallthru
      _
    // Predicated region
    $region26: #{tpu_custom_call.1} parent=1 // pred_check
      _
    $region27: #{tpu_custom_call.1} parent=1 // pred_check_branch
      %131 = sbr.rel (0) target = $region29
    $region28: #{tpu_custom_call.1} parent=1 // pred_region
      %133 = vsyncadd [#allocation9], 0
      %s134 = sshll.u32 [#allocation10], 4
      %s135 = int_to_ptr.vmem [resolvable:$true] %s134
      %s136 = sshll.u32 %s4, 4
      %s137 = int_to_ptr.hbm [resolvable:$true] %s136
      %142 = dma.vmem_to_hbm [thread:$0]  %s135, 256, %s137, [#allocation9], 128, 128, 8
    $region29: #{tpu_custom_call.1} parent=1 // pred_fallthru
      _
    // Predicated region
    $region30: #{tpu_custom_call.1} parent=1 // pred_check
      _
    $region31: #{tpu_custom_call.1} parent=1 // pred_check_branch
      %144 = sbr.rel (0) target = $region33
    $region32: #{tpu_custom_call.1} parent=1 // pred_region
      %146 = dma.done [#allocation4], 256
    $region33: #{tpu_custom_call.1} parent=1 // pred_fallthru
      _
    // Predicated region
    $region34: #{tpu_custom_call.1} parent=1 // pred_check
      _
    $region35: #{tpu_custom_call.1} parent=1 // pred_check_branch
      %148 = sbr.rel (0) target = $region37
    $region36: #{tpu_custom_call.1} parent=1 // pred_region
      %150 = dma.done [#allocation9], 256
    $region37: #{tpu_custom_call.1} parent=1 // pred_fallthru
      _
    // Predicated region
    $region38: #{tpu_custom_call.1} parent=1 // pred_check
      _
    $region39: #{tpu_custom_call.1} parent=1 // pred_check_branch
      %152 = sbr.rel (0) target = $region41
    $region40: #{tpu_custom_call.1} parent=1 // pred_region
      %154 = dma.done [#allocation9], 256
    $region41: #{tpu_custom_call.1} parent=1 // pred_fallthru
      _
    %155 = vsyncpa [#allocation3], 1
    %156 = vsyncpa [#allocation6], 1
    %157 = vsyncpa [#allocation4], 1
    %158 = vsyncpa [#allocation9], 1

</llo_original>
